<compile_context>
chip_gen: v6e
topology: v6e:2x2x1
jax: 0.10.0
libtpu: 0.0.40
codegen_flags: <defaults>
</compile_context>

<pallas_src>
import functools

import numpy as np

import jax
import jax.numpy as jnp
from jax.experimental import pallas as pl
from jax.experimental.pallas import tpu as pltpu


def _resnet_block_kernel(x_ref, mask_ref, wc_ref, ws_ref, bs_ref, out_ref, *,
                         dilation: int, K: int, H: int, W: int):
    # x_ref    : (N, Cin, H*W)       f32, NCHW flattened (spatial on lanes)
    # mask_ref : (K*K, 1, H*W)       f32 border-validity masks per tap
    # wc_ref   : (Cout, K*K*Cin)     conv weight, tap-major then ci (matches im2col)
    # ws_ref   : (Cout, Cin)         1x1 shortcut weight
    # bs_ref   : (Cout, 1)           shortcut bias
    # out_ref  : (N, Cout, H*W)
    N, Cin, P = x_ref.shape
    ctr = K // 2

    for n in range(N):  # batch folded into one grid step (N is small & static)
        x = x_ref[n]  # (Cin, P)

        # --- build im2col (K*K*Cin, P) via lane rolls + zero-border masks ---
        cols = []
        t = 0
        for kh in range(K):
            for kw in range(K):
                dh = (kh - ctr) * dilation
                dw = (kw - ctr) * dilation
                s = dh * W + dw  # flat spatial offset of this tap
                if s == 0:
                    cols.append(x)  # center tap: no shift, mask is all-ones
                else:
                    # want col[:, p] = x[:, p + s]  ->  roll by -s (mod P)
                    shifted = pltpu.roll(x, shift=(-s) % P, axis=1)
                    cols.append(shifted * mask_ref[t])
                t += 1
        col = jnp.concatenate(cols, axis=0)  # (K*K*Cin, P)

        # --- 3x3 dilated conv as a single matmul: (Cout,K*K*Cin) x (K*K*Cin,P) ---
        acc = jnp.dot(wc_ref[...], col, preferred_element_type=jnp.float32)
        # conv bias omitted: exactly cancelled by InstanceNorm(affine=False)

        # --- InstanceNorm2d(affine=False, eps=1e-5): per-channel over spatial ---
        mean = jnp.mean(acc, axis=1, keepdims=True)               # (Cout, 1)
        var = jnp.mean(acc * acc, axis=1, keepdims=True) - mean * mean
        y = (acc - mean) * jax.lax.rsqrt(var + 1e-5)

        # --- ReLU ---
        y = jnp.maximum(y, 0.0)

        # --- shortcut 1x1 conv (dim_in != dim_out) on the unpadded input ---
        sc = jnp.dot(ws_ref[...], x, preferred_element_type=jnp.float32) + bs_ref[...]

        # --- residual add, lane-dense store ---
        out_ref[n] = (sc + y).astype(out_ref.dtype)


def resnet_block_forward(x_nchw, wc, bc, ws, bs, *, dilation=1):
    """x_nchw: (N, Cin, H, W). wc: (K,K,Cin,Cout) HWIO. ws: (Cin, Cout).

    Note: bc (conv bias) is accepted for API parity but not used — it is
    mathematically cancelled by InstanceNorm2d(affine=False).
    """
    del bc
    N, Cin, H, W = x_nchw.shape
    K, _, _, Cout = wc.shape
    P = H * W

    # Free reshape: NCHW is already channels-major / spatial-minor.
    x_flat = x_nchw.reshape(N, Cin, P)

    # Conv weight -> (Cout, K*K*Cin) with row order (kh, kw, ci) matching im2col.
    wc2 = jnp.transpose(wc, (3, 0, 1, 2)).reshape(Cout, K * K * Cin)
    ws2 = jnp.transpose(ws, (1, 0))          # (Cout, Cin)
    bs2 = bs.reshape(Cout, 1)

    # Precomputed (compile-time constant) border masks, one per tap: zero where the
    # tap would read outside the H x W image (emulates 'zero' padding).
    ctr = K // 2
    hh = np.arange(H).reshape(H, 1)
    ww = np.arange(W).reshape(1, W)
    mask_list = []
    for kh in range(K):
        for kw in range(K):
            dh = (kh - ctr) * dilation
            dw = (kw - ctr) * dilation
            m = ((hh + dh >= 0) & (hh + dh < H) & (ww + dw >= 0) & (ww + dw < W))
            mask_list.append(m.reshape(1, P))
    tap_mask = jnp.asarray(
        np.concatenate(mask_list, axis=0).astype(np.float32)
    ).reshape(K * K, 1, P).astype(x_nchw.dtype)

    kernel = functools.partial(_resnet_block_kernel,
                               dilation=dilation, K=K, H=H, W=W)

    # Single grid step: everything fits VMEM at these shapes; for large images one
    # would add a "parallel" row-tile axis (and shrink tiles for v7x's 64 MiB VMEM).
    out_flat = pl.pallas_call(
        kernel,
        out_shape=jax.ShapeDtypeStruct((N, Cout, P), x_nchw.dtype),
        grid_spec=pltpu.PrefetchScalarGridSpec(
            num_scalar_prefetch=0,
            grid=(1,),
            in_specs=[
                pl.BlockSpec((N, Cin, P), lambda i: (0, 0, 0)),
                pl.BlockSpec((K * K, 1, P), lambda i: (0, 0, 0)),
                pl.BlockSpec((Cout, K * K * Cin), lambda i: (0, 0)),
                pl.BlockSpec((Cout, Cin), lambda i: (0, 0)),
                pl.BlockSpec((Cout, 1), lambda i: (0, 0)),
            ],
            out_specs=pl.BlockSpec((N, Cout, P), lambda i: (0, 0, 0)),
        ),
        compiler_params=pltpu.CompilerParams(
            dimension_semantics=("arbitrary",)),
    )(x_flat, tap_mask, wc2, ws2, bs2)

    return out_flat.reshape(N, Cout, H, W)


def resnet_block_reference(x_nchw, wc, bc, ws, bs, *, dilation=1):
    """Pure-JAX reference with identical semantics (for verification)."""
    out = jax.lax.conv_general_dilated(
        x_nchw, jnp.transpose(wc, (3, 2, 0, 1)),          # HWIO -> OIHW
        window_strides=(1, 1),
        padding=[(dilation, dilation), (dilation, dilation)],
        rhs_dilation=(dilation, dilation),
        dimension_numbers=('NCHW', 'OIHW', 'NCHW'))
    out = out + bc.reshape(1, -1, 1, 1)
    mean = out.mean(axis=(2, 3), keepdims=True)
    var = ((out - mean) ** 2).mean(axis=(2, 3), keepdims=True)
    out = (out - mean) / jnp.sqrt(var + 1e-5)
    out = jnp.maximum(out, 0.0)
    sc = jnp.einsum('nchw,cd->ndhw', x_nchw, ws) + bs.reshape(1, -1, 1, 1)
    return sc + out


if __name__ == "__main__":
    # Module config: dim_in=4, dim_out=8 (exercises the 1x1 shortcut),
    # padding_type='zero', norm_layer=InstanceNorm2d, use_dropout=False,
    # use_bias=True, dilation=1.
    N, Cin, Cout, H, W, K, dilation = 2, 4, 8, 16, 16, 3, 1

    key = jax.random.PRNGKey(0)
    kx, kwc, kbc, kws, kbs = jax.random.split(key, 5)
    x = jax.random.normal(kx, (N, Cin, H, W), dtype=jnp.float32)
    wc = jax.random.normal(kwc, (K, K, Cin, Cout), dtype=jnp.float32) * 0.1
    bc = jax.random.normal(kbc, (Cout,), dtype=jnp.float32) * 0.1
    ws = jax.random.normal(kws, (Cin, Cout), dtype=jnp.float32) * 0.1
    bs = jax.random.normal(kbs, (Cout,), dtype=jnp.float32) * 0.1

    out = resnet_block_forward(x, wc, bc, ws, bs, dilation=dilation)
    out = jax.block_until_ready(out)

    ref = jax.block_until_ready(
        resnet_block_reference(x, wc, bc, ws, bs, dilation=dilation))
    assert out.shape == (N, Cout, H, W)
    # f32 MXU matmuls + single-pass variance: slightly looser than 1e-4.
    assert jnp.allclose(out, ref, atol=5e-4, rtol=5e-4), \
        f"max err {jnp.max(jnp.abs(out - ref))}"

    print("KERNEL_OK")
</pallas_src>

<mosaic_0001>
module attributes {stable_mosaic.version = 11 : i64} {
  func.func @_resnet_block_kernel(%arg0: i32, %arg1: memref<2x4x256xf32, #tpu.memory_space<vmem>>, %arg2: memref<9x1x256xf32, #tpu.memory_space<vmem>>, %arg3: memref<8x36xf32, #tpu.memory_space<vmem>>, %arg4: memref<8x4xf32, #tpu.memory_space<vmem>>, %arg5: memref<8x1xf32, #tpu.memory_space<vmem>>, %arg6: memref<2x8x256xf32, #tpu.memory_space<vmem>>) attributes {dimension_semantics = [#tpu.dimension_semantics<arbitrary>], iteration_bounds = array<i64: 1>, scalar_prefetch = 0 : i64, scratch_operands = 0 : i64, tpu.core_type = #tpu.core_type<tc>, window_params = [{pipeline_mode = #tpu.pipeline_mode<synchronous>, transform_indices = @transform_0, window_bounds = array<i64: 2, 4, 256>}, {pipeline_mode = #tpu.pipeline_mode<synchronous>, transform_indices = @transform_1, window_bounds = array<i64: 9, 1, 256>}, {pipeline_mode = #tpu.pipeline_mode<synchronous>, transform_indices = @transform_2, window_bounds = array<i64: 8, 36>}, {pipeline_mode = #tpu.pipeline_mode<synchronous>, transform_indices = @transform_3, window_bounds = array<i64: 8, 4>}, {pipeline_mode = #tpu.pipeline_mode<synchronous>, transform_indices = @transform_4, window_bounds = array<i64: 8, 1>}, {pipeline_mode = #tpu.pipeline_mode<synchronous>, transform_indices = @transform_5, window_bounds = array<i64: 2, 8, 256>}]} {
    %c0 = arith.constant 0 : index
    %c0_0 = arith.constant 0 : index
    %c0_1 = arith.constant 0 : index
    %0 = vector.load %arg1[%c0, %c0_0, %c0_1] : memref<2x4x256xf32, #tpu.memory_space<vmem>>, vector<1x4x256xf32>
    %1 = vector.shape_cast %0 : vector<1x4x256xf32> to vector<4x256xf32>
    %c17_i32 = arith.constant 17 : i32
    %2 = tpu.dynamic_rotate %1 by %c17_i32 dim 1 : vector<4x256xf32>, i32 -> vector<4x256xf32>
    %c0_2 = arith.constant 0 : index
    %c0_3 = arith.constant 0 : index
    %c0_4 = arith.constant 0 : index
    %3 = vector.load %arg2[%c0_2, %c0_3, %c0_4] : memref<9x1x256xf32, #tpu.memory_space<vmem>>, vector<1x1x256xf32>
    %4 = vector.shape_cast %3 : vector<1x1x256xf32> to vector<1x256xf32>
    %5 = vector.broadcast %4 : vector<1x256xf32> to vector<4x256xf32>
    %6 = arith.mulf %2, %5 : vector<4x256xf32>
    %c16_i32 = arith.constant 16 : i32
    %7 = tpu.dynamic_rotate %1 by %c16_i32 dim 1 : vector<4x256xf32>, i32 -> vector<4x256xf32>
    %c1 = arith.constant 1 : index
    %c0_5 = arith.constant 0 : index
    %c0_6 = arith.constant 0 : index
    %8 = vector.load %arg2[%c1, %c0_5, %c0_6] : memref<9x1x256xf32, #tpu.memory_space<vmem>>, vector<1x1x256xf32>
    %9 = vector.shape_cast %8 : vector<1x1x256xf32> to vector<1x256xf32>
    %10 = vector.broadcast %9 : vector<1x256xf32> to vector<4x256xf32>
    %11 = arith.mulf %7, %10 : vector<4x256xf32>
    %c15_i32 = arith.constant 15 : i32
    %12 = tpu.dynamic_rotate %1 by %c15_i32 dim 1 : vector<4x256xf32>, i32 -> vector<4x256xf32>
    %c2 = arith.constant 2 : index
    %c0_7 = arith.constant 0 : index
    %c0_8 = arith.constant 0 : index
    %13 = vector.load %arg2[%c2, %c0_7, %c0_8] : memref<9x1x256xf32, #tpu.memory_space<vmem>>, vector<1x1x256xf32>
    %14 = vector.shape_cast %13 : vector<1x1x256xf32> to vector<1x256xf32>
    %15 = vector.broadcast %14 : vector<1x256xf32> to vector<4x256xf32>
    %16 = arith.mulf %12, %15 : vector<4x256xf32>
    %c1_i32 = arith.constant 1 : i32
    %17 = tpu.dynamic_rotate %1 by %c1_i32 dim 1 : vector<4x256xf32>, i32 -> vector<4x256xf32>
    %c3 = arith.constant 3 : index
    %c0_9 = arith.constant 0 : index
    %c0_10 = arith.constant 0 : index
    %18 = vector.load %arg2[%c3, %c0_9, %c0_10] : memref<9x1x256xf32, #tpu.memory_space<vmem>>, vector<1x1x256xf32>
    %19 = vector.shape_cast %18 : vector<1x1x256xf32> to vector<1x256xf32>
    %20 = vector.broadcast %19 : vector<1x256xf32> to vector<4x256xf32>
    %21 = arith.mulf %17, %20 : vector<4x256xf32>
    %c255_i32 = arith.constant 255 : i32
    %22 = tpu.dynamic_rotate %1 by %c255_i32 dim 1 : vector<4x256xf32>, i32 -> vector<4x256xf32>
    %c5 = arith.constant 5 : index
    %c0_11 = arith.constant 0 : index
    %c0_12 = arith.constant 0 : index
    %23 = vector.load %arg2[%c5, %c0_11, %c0_12] : memref<9x1x256xf32, #tpu.memory_space<vmem>>, vector<1x1x256xf32>
    %24 = vector.shape_cast %23 : vector<1x1x256xf32> to vector<1x256xf32>
    %25 = vector.broadcast %24 : vector<1x256xf32> to vector<4x256xf32>
    %26 = arith.mulf %22, %25 : vector<4x256xf32>
    %c241_i32 = arith.constant 241 : i32
    %27 = tpu.dynamic_rotate %1 by %c241_i32 dim 1 : vector<4x256xf32>, i32 -> vector<4x256xf32>
    %c6 = arith.constant 6 : index
    %c0_13 = arith.constant 0 : index
    %c0_14 = arith.constant 0 : index
    %28 = vector.load %arg2[%c6, %c0_13, %c0_14] : memref<9x1x256xf32, #tpu.memory_space<vmem>>, vector<1x1x256xf32>
    %29 = vector.shape_cast %28 : vector<1x1x256xf32> to vector<1x256xf32>
    %30 = vector.broadcast %29 : vector<1x256xf32> to vector<4x256xf32>
    %31 = arith.mulf %27, %30 : vector<4x256xf32>
    %c240_i32 = arith.constant 240 : i32
    %32 = tpu.dynamic_rotate %1 by %c240_i32 dim 1 : vector<4x256xf32>, i32 -> vector<4x256xf32>
    %c7 = arith.constant 7 : index
    %c0_15 = arith.constant 0 : index
    %c0_16 = arith.constant 0 : index
    %33 = vector.load %arg2[%c7, %c0_15, %c0_16] : memref<9x1x256xf32, #tpu.memory_space<vmem>>, vector<1x1x256xf32>
    %34 = vector.shape_cast %33 : vector<1x1x256xf32> to vector<1x256xf32>
    %35 = vector.broadcast %34 : vector<1x256xf32> to vector<4x256xf32>
    %36 = arith.mulf %32, %35 : vector<4x256xf32>
    %c239_i32 = arith.constant 239 : i32
    %37 = tpu.dynamic_rotate %1 by %c239_i32 dim 1 : vector<4x256xf32>, i32 -> vector<4x256xf32>
    %c8 = arith.constant 8 : index
    %c0_17 = arith.constant 0 : index
    %c0_18 = arith.constant 0 : index
    %38 = vector.load %arg2[%c8, %c0_17, %c0_18] : memref<9x1x256xf32, #tpu.memory_space<vmem>>, vector<1x1x256xf32>
    %39 = vector.shape_cast %38 : vector<1x1x256xf32> to vector<1x256xf32>
    %40 = vector.broadcast %39 : vector<1x256xf32> to vector<4x256xf32>
    %41 = arith.mulf %37, %40 : vector<4x256xf32>
    %42 = tpu.concatenate %6, %11, %16, %21, %1, %26, %31, %36, %41 in 0 : vector<4x256xf32>, vector<4x256xf32>, vector<4x256xf32>, vector<4x256xf32>, vector<4x256xf32>, vector<4x256xf32>, vector<4x256xf32>, vector<4x256xf32>, vector<4x256xf32> -> vector<36x256xf32>
    %c0_19 = arith.constant 0 : index
    %c0_20 = arith.constant 0 : index
    %43 = vector.load %arg3[%c0_19, %c0_20] : memref<8x36xf32, #tpu.memory_space<vmem>>, vector<8x36xf32>
    %cst = arith.constant dense<0.000000e+00> : vector<8x256xf32>
    %44 = tpu.matmul %43, %42, %cst {dimension_numbers = #tpu.dot_dimension_numbers<[1], [0], [0], [1], [0, 0, 1, 1], [], []>} : vector<8x36xf32>, vector<36x256xf32>, vector<8x256xf32> -> vector<8x256xf32>
    %cst_21 = arith.constant dense<0.000000e+00> : vector<8xf32>
    %45 = vector.multi_reduction <add>, %44, %cst_21 [1] : vector<8x256xf32> to vector<8xf32>
    %46 = vector.shape_cast %45 : vector<8xf32> to vector<8x1xf32>
    %cst_22 = arith.constant 2.560000e+02 : f32
    %47 = vector.broadcast %cst_22 : f32 to vector<8x1xf32>
    %48 = arith.divf %46, %47 : vector<8x1xf32>
    %49 = arith.mulf %44, %44 : vector<8x256xf32>
    %cst_23 = arith.constant dense<0.000000e+00> : vector<8xf32>
    %50 = vector.multi_reduction <add>, %49, %cst_23 [1] : vector<8x256xf32> to vector<8xf32>
    %51 = vector.shape_cast %50 : vector<8xf32> to vector<8x1xf32>
    %cst_24 = arith.constant 2.560000e+02 : f32
    %52 = vector.broadcast %cst_24 : f32 to vector<8x1xf32>
    %53 = arith.divf %51, %52 : vector<8x1xf32>
    %54 = arith.mulf %48, %48 : vector<8x1xf32>
    %55 = arith.subf %53, %54 : vector<8x1xf32>
    %56 = vector.broadcast %48 : vector<8x1xf32> to vector<8x256xf32>
    %57 = arith.subf %44, %56 : vector<8x256xf32>
    %cst_25 = arith.constant 9.99999974E-6 : f32
    %58 = vector.broadcast %cst_25 : f32 to vector<8x1xf32>
    %59 = arith.addf %55, %58 : vector<8x1xf32>
    %60 = math.rsqrt %59 : vector<8x1xf32>
    %61 = vector.broadcast %60 : vector<8x1xf32> to vector<8x256xf32>
    %62 = arith.mulf %57, %61 : vector<8x256xf32>
    %cst_26 = arith.constant 0.000000e+00 : f32
    %63 = vector.broadcast %cst_26 : f32 to vector<8x256xf32>
    %64 = arith.maximumf %62, %63 : vector<8x256xf32>
    %c0_27 = arith.constant 0 : index
    %c0_28 = arith.constant 0 : index
    %65 = vector.load %arg4[%c0_27, %c0_28] : memref<8x4xf32, #tpu.memory_space<vmem>>, vector<8x4xf32>
    %cst_29 = arith.constant dense<0.000000e+00> : vector<8x256xf32>
    %66 = tpu.matmul %65, %1, %cst_29 {dimension_numbers = #tpu.dot_dimension_numbers<[1], [0], [0], [1], [0, 0, 1, 1], [], []>} : vector<8x4xf32>, vector<4x256xf32>, vector<8x256xf32> -> vector<8x256xf32>
    %c0_30 = arith.constant 0 : index
    %c0_31 = arith.constant 0 : index
    %67 = vector.load %arg5[%c0_30, %c0_31] : memref<8x1xf32, #tpu.memory_space<vmem>>, vector<8x1xf32>
    %68 = vector.broadcast %67 : vector<8x1xf32> to vector<8x256xf32>
    %69 = arith.addf %66, %68 : vector<8x256xf32>
    %70 = arith.addf %69, %64 : vector<8x256xf32>
    %c0_32 = arith.constant 0 : index
    %c0_33 = arith.constant 0 : index
    %c0_34 = arith.constant 0 : index
    %71 = vector.load %arg6[%c0_32, %c0_33, %c0_34] : memref<2x8x256xf32, #tpu.memory_space<vmem>>, vector<1x8x256xf32>
    %72 = vector.shape_cast %71 : vector<1x8x256xf32> to vector<8x256xf32>
    %73 = vector.shape_cast %70 : vector<8x256xf32> to vector<1x8x256xf32>
    tpu.vector_store %arg6[%c0_32, %c0_33, %c0_34], %73 {strides = array<i32>} : memref<2x8x256xf32, #tpu.memory_space<vmem>>, vector<1x8x256xf32>,
    %c1_35 = arith.constant 1 : index
    %c0_36 = arith.constant 0 : index
    %c0_37 = arith.constant 0 : index
    %74 = vector.load %arg1[%c1_35, %c0_36, %c0_37] : memref<2x4x256xf32, #tpu.memory_space<vmem>>, vector<1x4x256xf32>
    %75 = vector.shape_cast %74 : vector<1x4x256xf32> to vector<4x256xf32>
    %c17_i32_38 = arith.constant 17 : i32
    %76 = tpu.dynamic_rotate %75 by %c17_i32_38 dim 1 : vector<4x256xf32>, i32 -> vector<4x256xf32>
    %c0_39 = arith.constant 0 : index
    %c0_40 = arith.constant 0 : index
    %c0_41 = arith.constant 0 : index
    %77 = vector.load %arg2[%c0_39, %c0_40, %c0_41] : memref<9x1x256xf32, #tpu.memory_space<vmem>>, vector<1x1x256xf32>
    %78 = vector.shape_cast %77 : vector<1x1x256xf32> to vector<1x256xf32>
    %79 = vector.broadcast %78 : vector<1x256xf32> to vector<4x256xf32>
    %80 = arith.mulf %76, %79 : vector<4x256xf32>
    %c16_i32_42 = arith.constant 16 : i32
    %81 = tpu.dynamic_rotate %75 by %c16_i32_42 dim 1 : vector<4x256xf32>, i32 -> vector<4x256xf32>
    %c1_43 = arith.constant 1 : index
    %c0_44 = arith.constant 0 : index
    %c0_45 = arith.constant 0 : index
    %82 = vector.load %arg2[%c1_43, %c0_44, %c0_45] : memref<9x1x256xf32, #tpu.memory_space<vmem>>, vector<1x1x256xf32>
    %83 = vector.shape_cast %82 : vector<1x1x256xf32> to vector<1x256xf32>
    %84 = vector.broadcast %83 : vector<1x256xf32> to vector<4x256xf32>
    %85 = arith.mulf %81, %84 : vector<4x256xf32>
    %c15_i32_46 = arith.constant 15 : i32
    %86 = tpu.dynamic_rotate %75 by %c15_i32_46 dim 1 : vector<4x256xf32>, i32 -> vector<4x256xf32>
    %c2_47 = arith.constant 2 : index
    %c0_48 = arith.constant 0 : index
    %c0_49 = arith.constant 0 : index
    %87 = vector.load %arg2[%c2_47, %c0_48, %c0_49] : memref<9x1x256xf32, #tpu.memory_space<vmem>>, vector<1x1x256xf32>
    %88 = vector.shape_cast %87 : vector<1x1x256xf32> to vector<1x256xf32>
    %89 = vector.broadcast %88 : vector<1x256xf32> to vector<4x256xf32>
    %90 = arith.mulf %86, %89 : vector<4x256xf32>
    %c1_i32_50 = arith.constant 1 : i32
    %91 = tpu.dynamic_rotate %75 by %c1_i32_50 dim 1 : vector<4x256xf32>, i32 -> vector<4x256xf32>
    %c3_51 = arith.constant 3 : index
    %c0_52 = arith.constant 0 : index
    %c0_53 = arith.constant 0 : index
    %92 = vector.load %arg2[%c3_51, %c0_52, %c0_53] : memref<9x1x256xf32, #tpu.memory_space<vmem>>, vector<1x1x256xf32>
    %93 = vector.shape_cast %92 : vector<1x1x256xf32> to vector<1x256xf32>
    %94 = vector.broadcast %93 : vector<1x256xf32> to vector<4x256xf32>
    %95 = arith.mulf %91, %94 : vector<4x256xf32>
    %c255_i32_54 = arith.constant 255 : i32
    %96 = tpu.dynamic_rotate %75 by %c255_i32_54 dim 1 : vector<4x256xf32>, i32 -> vector<4x256xf32>
    %c5_55 = arith.constant 5 : index
    %c0_56 = arith.constant 0 : index
    %c0_57 = arith.constant 0 : index
    %97 = vector.load %arg2[%c5_55, %c0_56, %c0_57] : memref<9x1x256xf32, #tpu.memory_space<vmem>>, vector<1x1x256xf32>
    %98 = vector.shape_cast %97 : vector<1x1x256xf32> to vector<1x256xf32>
    %99 = vector.broadcast %98 : vector<1x256xf32> to vector<4x256xf32>
    %100 = arith.mulf %96, %99 : vector<4x256xf32>
    %c241_i32_58 = arith.constant 241 : i32
    %101 = tpu.dynamic_rotate %75 by %c241_i32_58 dim 1 : vector<4x256xf32>, i32 -> vector<4x256xf32>
    %c6_59 = arith.constant 6 : index
    %c0_60 = arith.constant 0 : index
    %c0_61 = arith.constant 0 : index
    %102 = vector.load %arg2[%c6_59, %c0_60, %c0_61] : memref<9x1x256xf32, #tpu.memory_space<vmem>>, vector<1x1x256xf32>
    %103 = vector.shape_cast %102 : vector<1x1x256xf32> to vector<1x256xf32>
    %104 = vector.broadcast %103 : vector<1x256xf32> to vector<4x256xf32>
    %105 = arith.mulf %101, %104 : vector<4x256xf32>
    %c240_i32_62 = arith.constant 240 : i32
    %106 = tpu.dynamic_rotate %75 by %c240_i32_62 dim 1 : vector<4x256xf32>, i32 -> vector<4x256xf32>
    %c7_63 = arith.constant 7 : index
    %c0_64 = arith.constant 0 : index
    %c0_65 = arith.constant 0 : index
    %107 = vector.load %arg2[%c7_63, %c0_64, %c0_65] : memref<9x1x256xf32, #tpu.memory_space<vmem>>, vector<1x1x256xf32>
    %108 = vector.shape_cast %107 : vector<1x1x256xf32> to vector<1x256xf32>
    %109 = vector.broadcast %108 : vector<1x256xf32> to vector<4x256xf32>
    %110 = arith.mulf %106, %109 : vector<4x256xf32>
    %c239_i32_66 = arith.constant 239 : i32
    %111 = tpu.dynamic_rotate %75 by %c239_i32_66 dim 1 : vector<4x256xf32>, i32 -> vector<4x256xf32>
    %c8_67 = arith.constant 8 : index
    %c0_68 = arith.constant 0 : index
    %c0_69 = arith.constant 0 : index
    %112 = vector.load %arg2[%c8_67, %c0_68, %c0_69] : memref<9x1x256xf32, #tpu.memory_space<vmem>>, vector<1x1x256xf32>
    %113 = vector.shape_cast %112 : vector<1x1x256xf32> to vector<1x256xf32>
    %114 = vector.broadcast %113 : vector<1x256xf32> to vector<4x256xf32>
    %115 = arith.mulf %111, %114 : vector<4x256xf32>
    %116 = tpu.concatenate %80, %85, %90, %95, %75, %100, %105, %110, %115 in 0 : vector<4x256xf32>, vector<4x256xf32>, vector<4x256xf32>, vector<4x256xf32>, vector<4x256xf32>, vector<4x256xf32>, vector<4x256xf32>, vector<4x256xf32>, vector<4x256xf32> -> vector<36x256xf32>
    %c0_70 = arith.constant 0 : index
    %c0_71 = arith.constant 0 : index
    %117 = vector.load %arg3[%c0_70, %c0_71] : memref<8x36xf32, #tpu.memory_space<vmem>>, vector<8x36xf32>
    %cst_72 = arith.constant dense<0.000000e+00> : vector<8x256xf32>
    %118 = tpu.matmul %117, %116, %cst_72 {dimension_numbers = #tpu.dot_dimension_numbers<[1], [0], [0], [1], [0, 0, 1, 1], [], []>} : vector<8x36xf32>, vector<36x256xf32>, vector<8x256xf32> -> vector<8x256xf32>
    %cst_73 = arith.constant dense<0.000000e+00> : vector<8xf32>
    %119 = vector.multi_reduction <add>, %118, %cst_73 [1] : vector<8x256xf32> to vector<8xf32>
    %120 = vector.shape_cast %119 : vector<8xf32> to vector<8x1xf32>
    %cst_74 = arith.constant 2.560000e+02 : f32
    %121 = vector.broadcast %cst_74 : f32 to vector<8x1xf32>
    %122 = arith.divf %120, %121 : vector<8x1xf32>
    %123 = arith.mulf %118, %118 : vector<8x256xf32>
    %cst_75 = arith.constant dense<0.000000e+00> : vector<8xf32>
    %124 = vector.multi_reduction <add>, %123, %cst_75 [1] : vector<8x256xf32> to vector<8xf32>
    %125 = vector.shape_cast %124 : vector<8xf32> to vector<8x1xf32>
    %cst_76 = arith.constant 2.560000e+02 : f32
    %126 = vector.broadcast %cst_76 : f32 to vector<8x1xf32>
    %127 = arith.divf %125, %126 : vector<8x1xf32>
    %128 = arith.mulf %122, %122 : vector<8x1xf32>
    %129 = arith.subf %127, %128 : vector<8x1xf32>
    %130 = vector.broadcast %122 : vector<8x1xf32> to vector<8x256xf32>
    %131 = arith.subf %118, %130 : vector<8x256xf32>
    %cst_77 = arith.constant 9.99999974E-6 : f32
    %132 = vector.broadcast %cst_77 : f32 to vector<8x1xf32>
    %133 = arith.addf %129, %132 : vector<8x1xf32>
    %134 = math.rsqrt %133 : vector<8x1xf32>
    %135 = vector.broadcast %134 : vector<8x1xf32> to vector<8x256xf32>
    %136 = arith.mulf %131, %135 : vector<8x256xf32>
    %cst_78 = arith.constant 0.000000e+00 : f32
    %137 = vector.broadcast %cst_78 : f32 to vector<8x256xf32>
    %138 = arith.maximumf %136, %137 : vector<8x256xf32>
    %c0_79 = arith.constant 0 : index
    %c0_80 = arith.constant 0 : index
    %139 = vector.load %arg4[%c0_79, %c0_80] : memref<8x4xf32, #tpu.memory_space<vmem>>, vector<8x4xf32>
    %cst_81 = arith.constant dense<0.000000e+00> : vector<8x256xf32>
    %140 = tpu.matmul %139, %75, %cst_81 {dimension_numbers = #tpu.dot_dimension_numbers<[1], [0], [0], [1], [0, 0, 1, 1], [], []>} : vector<8x4xf32>, vector<4x256xf32>, vector<8x256xf32> -> vector<8x256xf32>
    %c0_82 = arith.constant 0 : index
    %c0_83 = arith.constant 0 : index
    %141 = vector.load %arg5[%c0_82, %c0_83] : memref<8x1xf32, #tpu.memory_space<vmem>>, vector<8x1xf32>
    %142 = vector.broadcast %141 : vector<8x1xf32> to vector<8x256xf32>
    %143 = arith.addf %140, %142 : vector<8x256xf32>
    %144 = arith.addf %143, %138 : vector<8x256xf32>
    %c1_84 = arith.constant 1 : index
    %c0_85 = arith.constant 0 : index
    %c0_86 = arith.constant 0 : index
    %145 = vector.load %arg6[%c1_84, %c0_85, %c0_86] : memref<2x8x256xf32, #tpu.memory_space<vmem>>, vector<1x8x256xf32>
    %146 = vector.shape_cast %145 : vector<1x8x256xf32> to vector<8x256xf32>
    %147 = vector.shape_cast %144 : vector<8x256xf32> to vector<1x8x256xf32>
    tpu.vector_store %arg6[%c1_84, %c0_85, %c0_86], %147 {strides = array<i32>} : memref<2x8x256xf32, #tpu.memory_space<vmem>>, vector<1x8x256xf32>,
    return
  }
  func.func @transform_0(%arg0: i32) -> (i32, i32, i32) {
    %c0_i32 = arith.constant 0 : i32
    %c0_i32_0 = arith.constant 0 : i32
    %c0_i32_1 = arith.constant 0 : i32
    %c0_i32_2 = arith.constant 0 : i32
    return %c0_i32, %c0_i32_0, %c0_i32_1 : i32, i32, i32
  }
  func.func @transform_1(%arg0: i32) -> (i32, i32, i32) {
    %c0_i32 = arith.constant 0 : i32
    %c0_i32_0 = arith.constant 0 : i32
    %c0_i32_1 = arith.constant 0 : i32
    %c0_i32_2 = arith.constant 0 : i32
    return %c0_i32, %c0_i32_0, %c0_i32_1 : i32, i32, i32
  }
  func.func @transform_2(%arg0: i32) -> (i32, i32) {
    %c0_i32 = arith.constant 0 : i32
    %c0_i32_0 = arith.constant 0 : i32
    %c0_i32_1 = arith.constant 0 : i32
    return %c0_i32, %c0_i32_0 : i32, i32
  }
  func.func @transform_3(%arg0: i32) -> (i32, i32) {
    %c0_i32 = arith.constant 0 : i32
    %c0_i32_0 = arith.constant 0 : i32
    %c0_i32_1 = arith.constant 0 : i32
    return %c0_i32, %c0_i32_0 : i32, i32
  }
  func.func @transform_4(%arg0: i32) -> (i32, i32) {
    %c0_i32 = arith.constant 0 : i32
    %c0_i32_0 = arith.constant 0 : i32
    %c0_i32_1 = arith.constant 0 : i32
    return %c0_i32, %c0_i32_0 : i32, i32
  }
  func.func @transform_5(%arg0: i32) -> (i32, i32, i32) {
    %c0_i32 = arith.constant 0 : i32
    %c0_i32_0 = arith.constant 0 : i32
    %c0_i32_1 = arith.constant 0 : i32
    %c0_i32_2 = arith.constant 0 : i32
    return %c0_i32, %c0_i32_0, %c0_i32_1 : i32, i32, i32
  }
}

</mosaic_0001>

<llo_original>
// kernel: tpu_custom_call.1
$region0: #{tpu_custom_call.1}
  #allocation0 [shape = 'u32[]', space=smem, size = 0x4, offset = 0x4, fixed_abs, tag = 'smem constant byte address 0x4 - core index']
  #allocation1 [shape = 'u32[144,128]{1,0:T(1,128)}', space=vmem, size = 0x12000, scoped, tag = 'internal scratch']
  %s0 = inlined_call_operand.hbm [shape: f32[2,4,256], index: 0, kind: input, shape index: {}]
  %s1 = inlined_call_operand.vmem [shape: f32[9,1,256], index: 1, kind: input, shape index: {}]
  %s2 = inlined_call_operand.hbm [shape: f32[8,36], index: 2, kind: input, shape index: {}]
  %s3 = inlined_call_operand.vmem [shape: f32[8,4], index: 3, kind: input, shape index: {}]
  %s4 = inlined_call_operand.vmem [shape: f32[8,1], index: 4, kind: input, shape index: {}]
  %s5 = inlined_call_operand.hbm [shape: f32[2,8,256], index: 5, kind: output, shape index: {}]
  %s6 = sld [smem:[#allocation0]]
  $region38: #{tpu_custom_call.1} parent=0
    _
  %s8 = ssub.s32 1, %s6
  %s9 = scalar_select 0, %s8, %s6
  $region1: #{tpu_custom_call.1} parent=0
    #allocation2 [shape = 'u8[8192]{0}', space=vmem, size = 0x2000, scoped, tag = 'input window, operand 0, single buffered']
    #allocation3 [shape = 's32[1]{0}', space=sflag, size = 0x4, scoped, tag = 'scoped memory for tpu_custom_call.1']
    #allocation4 [shape = 's32[1]{0}', space=sflag, size = 0x4, scoped, tag = 'scoped memory for tpu_custom_call.1']
    #allocation5 [shape = 'u8[4096]{0}', space=vmem, size = 0x1000, scoped, tag = 'input window, operand 2, single buffered']
    #allocation6 [shape = 's32[1]{0}', space=sflag, size = 0x4, scoped, tag = 'scoped memory for tpu_custom_call.1']
    #allocation7 [shape = 'u8[16384]{0}', space=vmem, size = 0x4000, scoped, tag = 'output window, operand 0, single buffered']
    %10 = vsyncpa [#allocation3], 0
    %11 = vsyncpa [#allocation6], 0
    %12 = vsyncpa [#allocation4], 0
    // Predicated region
    $region2: #{tpu_custom_call.1} parent=1 // pred_check
      _
    $region3: #{tpu_custom_call.1} parent=1 // pred_check_branch
      %14 = sbr.rel (0) target = $region5
    $region4: #{tpu_custom_call.1} parent=1 // pred_region
      %s16 = ssub.s32 256, 256
      %17 = vsyncadd [#allocation3], %s16
      %s18 = sshll.u32 [#allocation2], 4
      %s19 = int_to_ptr.vmem [resolvable:$true] %s18
      %24 = dma.hbm_to_vmem [thread:$0]  %s0, 256, %s19, [#allocation3], 128, 128, 8
    $region5: #{tpu_custom_call.1} parent=1 // pred_fallthru
      _
    // Predicated region
    $region6: #{tpu_custom_call.1} parent=1 // pred_check
      _
    $region7: #{tpu_custom_call.1} parent=1 // pred_check_branch
      %26 = sbr.rel (0) target = $region9
    $region8: #{tpu_custom_call.1} parent=1 // pred_region
      _
    $region9: #{tpu_custom_call.1} parent=1 // pred_fallthru
      _
    // Predicated region
    $region10: #{tpu_custom_call.1} parent=1 // pred_check
      _
    $region11: #{tpu_custom_call.1} parent=1 // pred_check_branch
      %28 = sbr.rel (0) target = $region13
    $region12: #{tpu_custom_call.1} parent=1 // pred_region
      %s30 = ssub.s32 128, 128
      %31 = vsyncadd [#allocation6], %s30
      %s33 = sshll.u32 [#allocation5], 4
      %s34 = int_to_ptr.vmem [resolvable:$true] %s33
      %36 = dma.hbm_to_vmem [thread:$0]  %s2, 128, %s34, [#allocation6]
    $region13: #{tpu_custom_call.1} parent=1 // pred_fallthru
      _
    // Predicated region
    $region14: #{tpu_custom_call.1} parent=1 // pred_check
      _
    $region15: #{tpu_custom_call.1} parent=1 // pred_check_branch
      %38 = sbr.rel (0) target = $region17
    $region16: #{tpu_custom_call.1} parent=1 // pred_region
      _
    $region17: #{tpu_custom_call.1} parent=1 // pred_fallthru
      _
    // Predicated region
    $region18: #{tpu_custom_call.1} parent=1 // pred_check
      _
    $region19: #{tpu_custom_call.1} parent=1 // pred_check_branch
      %40 = sbr.rel (0) target = $region21
    $region20: #{tpu_custom_call.1} parent=1 // pred_region
      _
    $region21: #{tpu_custom_call.1} parent=1 // pred_fallthru
      _
    // Predicated region
    $region22: #{tpu_custom_call.1} parent=1 // pred_check
      _
    $region23: #{tpu_custom_call.1} parent=1 // pred_check_branch
      %42 = sbr.rel (0) target = $region25
    $region24: #{tpu_custom_call.1} parent=1 // pred_region
      %43 = dma.done [#allocation3], 256
    $region25: #{tpu_custom_call.1} parent=1 // pred_fallthru
      _
    // Predicated region
    $region26: #{tpu_custom_call.1} parent=1 // pred_check
      _
    $region27: #{tpu_custom_call.1} parent=1 // pred_check_branch
      %45 = sbr.rel (0) target = $region29
    $region28: #{tpu_custom_call.1} parent=1 // pred_region
      %46 = dma.done [#allocation6], 128
    $region29: #{tpu_custom_call.1} parent=1 // pred_fallthru
      _
    %v47 = vld [vmem:[#allocation2] sm:$0xff]
    %v49 = vcombine.high %v47, %v47
    %51 = vrot.lane.b32.xlu0 %v47, 17
    %v52 = vpop.permute.xlu0 %51
    %53 = vrot.lane.b32.xlu0 %v49, 17
    %v54 = vpop.permute.xlu0 %53
    %v55 = vlaneseq
    %v56 = vand.u32 %v55, 127
    %vm57 = vcmp.lt.s32.totalorder %v56, 17
    %v58 = vsel %vm57, %v52, %v54
    %v59 = vsel %vm57, %v54, %v52
    %v60 = vld [vmem:[%s1] sm:$0x3]
    %v62 = vlaneseq
    %v63 = vshrl.u32 %v62, 7
    %v64 = vsub.s32 0, %v63
    %v65 = vrot.slane %v60, %v64
    %v66 = vlaneseq
    %v67 = vshrl.u32 %v66, 7
    %v68 = vsub.s32 1, %v67
    %v69 = vrot.slane %v60, %v68
    %v72 = vmul.f32 %v59, %v65
    %v73 = vmul.f32 %v58, %v69
    %74 = vrot.lane.b32.xlu0 %v47, 16
    %v75 = vpop.permute.xlu0 %74
    %76 = vrot.lane.b32.xlu0 %v49, 16
    %v77 = vpop.permute.xlu0 %76
    %vm78 = vcmp.lt.s32.totalorder %v56, 16
    %v79 = vsel %vm78, %v75, %v77
    %v80 = vsel %vm78, %v77, %v75
    %s81 = scalar_lea.vmem %s1, 2
    %v82 = vld [vmem:[%s81] sm:$0x3]
    %v84 = vlaneseq
    %v85 = vshrl.u32 %v84, 7
    %v86 = vsub.s32 0, %v85
    %v87 = vrot.slane %v82, %v86
    %v88 = vlaneseq
    %v89 = vshrl.u32 %v88, 7
    %v90 = vsub.s32 1, %v89
    %v91 = vrot.slane %v82, %v90
    %v94 = vmul.f32 %v80, %v87
    %v95 = vmul.f32 %v79, %v91
    %96 = vrot.lane.b32.xlu0 %v47, 15
    %v97 = vpop.permute.xlu0 %96
    %98 = vrot.lane.b32.xlu0 %v49, 15
    %v99 = vpop.permute.xlu0 %98
    %vm100 = vcmp.lt.s32.totalorder %v56, 15
    %v101 = vsel %vm100, %v97, %v99
    %v102 = vsel %vm100, %v99, %v97
    %s103 = scalar_lea.vmem %s1, 4
    %v104 = vld [vmem:[%s103] sm:$0x3]
    %v106 = vlaneseq
    %v107 = vshrl.u32 %v106, 7
    %v108 = vsub.s32 0, %v107
    %v109 = vrot.slane %v104, %v108
    %v110 = vlaneseq
    %v111 = vshrl.u32 %v110, 7
    %v112 = vsub.s32 1, %v111
    %v113 = vrot.slane %v104, %v112
    %v116 = vmul.f32 %v102, %v109
    %v117 = vmul.f32 %v101, %v113
    %118 = vrot.lane.b32.xlu0 %v47, 1
    %v119 = vpop.permute.xlu0 %118
    %120 = vrot.lane.b32.xlu0 %v49, 1
    %v121 = vpop.permute.xlu0 %120
    %vm122 = vcmp.lt.s32.totalorder %v56, 1
    %v123 = vsel %vm122, %v119, %v121
    %v124 = vsel %vm122, %v121, %v119
    %s125 = scalar_lea.vmem %s1, 6
    %v126 = vld [vmem:[%s125] sm:$0x3]
    %v128 = vlaneseq
    %v129 = vshrl.u32 %v128, 7
    %v130 = vsub.s32 0, %v129
    %v131 = vrot.slane %v126, %v130
    %v132 = vlaneseq
    %v133 = vshrl.u32 %v132, 7
    %v134 = vsub.s32 1, %v133
    %v135 = vrot.slane %v126, %v134
    %v138 = vmul.f32 %v124, %v131
    %v139 = vmul.f32 %v123, %v135
    %140 = vrot.lane.b32.xlu0 %v47, 127
    %v141 = vpop.permute.xlu0 %140
    %142 = vrot.lane.b32.xlu0 %v49, 127
    %v143 = vpop.permute.xlu0 %142
    %vm144 = vcmp.lt.s32.totalorder %v56, 127
    %v145 = vsel %vm144, %v141, %v143
    %v146 = vsel %vm144, %v143, %v141
    %s147 = scalar_lea.vmem %s1, 10
    %v148 = vld [vmem:[%s147] sm:$0x3]
    %v150 = vlaneseq
    %v151 = vshrl.u32 %v150, 7
    %v152 = vsub.s32 0, %v151
    %v153 = vrot.slane %v148, %v152
    %v154 = vlaneseq
    %v155 = vshrl.u32 %v154, 7
    %v156 = vsub.s32 1, %v155
    %v157 = vrot.slane %v148, %v156
    %v160 = vmul.f32 %v145, %v153
    %v161 = vmul.f32 %v146, %v157
    %162 = vrot.lane.b32.xlu0 %v47, 113
    %v163 = vpop.permute.xlu0 %162
    %164 = vrot.lane.b32.xlu0 %v49, 113
    %v165 = vpop.permute.xlu0 %164
    %vm166 = vcmp.lt.s32.totalorder %v56, 113
    %v167 = vsel %vm166, %v163, %v165
    %v168 = vsel %vm166, %v165, %v163
    %s169 = scalar_lea.vmem %s1, 12
    %v170 = vld [vmem:[%s169] sm:$0x3]
    %v172 = vlaneseq
    %v173 = vshrl.u32 %v172, 7
    %v174 = vsub.s32 0, %v173
    %v175 = vrot.slane %v170, %v174
    %v176 = vlaneseq
    %v177 = vshrl.u32 %v176, 7
    %v178 = vsub.s32 1, %v177
    %v179 = vrot.slane %v170, %v178
    %v182 = vmul.f32 %v167, %v175
    %v183 = vmul.f32 %v168, %v179
    %184 = vrot.lane.b32.xlu0 %v47, 112
    %v185 = vpop.permute.xlu0 %184
    %186 = vrot.lane.b32.xlu0 %v49, 112
    %v187 = vpop.permute.xlu0 %186
    %vm188 = vcmp.lt.s32.totalorder %v56, 112
    %v189 = vsel %vm188, %v185, %v187
    %v190 = vsel %vm188, %v187, %v185
    %s191 = scalar_lea.vmem %s1, 14
    %v192 = vld [vmem:[%s191] sm:$0x3]
    %v194 = vlaneseq
    %v195 = vshrl.u32 %v194, 7
    %v196 = vsub.s32 0, %v195
    %v197 = vrot.slane %v192, %v196
    %v198 = vlaneseq
    %v199 = vshrl.u32 %v198, 7
    %v200 = vsub.s32 1, %v199
    %v201 = vrot.slane %v192, %v200
    %v204 = vmul.f32 %v189, %v197
    %v205 = vmul.f32 %v190, %v201
    %206 = vrot.lane.b32.xlu0 %v47, 111
    %v207 = vpop.permute.xlu0 %206
    %208 = vrot.lane.b32.xlu0 %v49, 111
    %v209 = vpop.permute.xlu0 %208
    %vm210 = vcmp.lt.s32.totalorder %v56, 111
    %v211 = vsel %vm210, %v207, %v209
    %v212 = vsel %vm210, %v209, %v207
    %s213 = scalar_lea.vmem %s1, 16
    %v214 = vld [vmem:[%s213] sm:$0x3]
    %v216 = vlaneseq
    %v217 = vshrl.u32 %v216, 7
    %v218 = vsub.s32 0, %v217
    %v219 = vrot.slane %v214, %v218
    %v220 = vlaneseq
    %v221 = vshrl.u32 %v220, 7
    %v222 = vsub.s32 1, %v221
    %v223 = vrot.slane %v214, %v222
    %v226 = vmul.f32 %v211, %v219
    %v227 = vmul.f32 %v212, %v223
    %v230 = vrot.slane %v94, 4
    %v231 = vrot.slane %v95, 4
    %v236 = vrot.slane %v138, 4
    %v237 = vrot.slane %v139, 4
    %v242 = vrot.slane %v160, 4
    %v243 = vrot.slane %v161, 4
    %v248 = vrot.slane %v204, 4
    %v249 = vrot.slane %v205, 4
    %vm252 = vcmask 1043456
    %v253 = vsel %vm252, %v72, %v230
    %v254 = vsel %vm252, %v73, %v231
    %v255 = vsel %vm252, %v116, %v236
    %v256 = vsel %vm252, %v117, %v237
    %v257 = vsel %vm252, %v47, %v242
    %v258 = vsel %vm252, %v49, %v243
    %v259 = vsel %vm252, %v182, %v248
    %v260 = vsel %vm252, %v183, %v249
    %v261 = vld [vmem:[#allocation5] sm:$0xff]
    %vm262 = vcmask 293888
    %v264 = vsel %vm262, %v261, 0
    %v267 = vsel %vm252, %v226, 0
    %v270 = vsel %vm252, %v227, 0
    %272 = vmatprep.subr.mxu0 0.0
    %273 = vmatpush1.msra.mxu0 0.0
    %274 = vmatprep.subr.mxu0 0.0
    %275 = vmatpush1.msra.mxu0 0.0
    %276 = vmatprep.subr.mxu0 0.0
    %277 = vmatpush1.msra.mxu0 0.0
    %278 = vmatprep.subr.mxu0 0.0
    %279 = vmatpush1.msra.mxu0 0.0
    %280 = vmatprep.subr.mxu0 0.0
    %281 = vmatpush1.msra.mxu0 0.0
    %282 = vmatprep.subr.mxu0 0.0
    %283 = vmatpush1.msra.mxu0 0.0
    %284 = vmatprep.subr.mxu0 0.0
    %285 = vmatpush1.msra.mxu0 0.0
    %286 = vmatprep.subr.mxu0 0.0
    %287 = vmatpush1.msra.mxu0 0.0
    %288 = vmatprep.subr.mxu0 0.0
    %289 = vmatpush1.msra.mxu0 0.0
    %290 = vmatprep.subr.mxu0 0.0
    %291 = vmatpush1.msra.mxu0 0.0
    %292 = vmatprep.subr.mxu0 0.0
    %293 = vmatpush1.msra.mxu0 0.0
    %294 = vmatprep.subr.mxu0 %v270
    %295 = vmatpush1.msra.mxu0 %v267
    %296 = vmatprep.subr.mxu0 %v260
    %297 = vmatpush1.msra.mxu0 %v259
    %298 = vmatprep.subr.mxu0 %v258
    %299 = vmatpush1.msra.mxu0 %v257
    %300 = vmatprep.subr.mxu0 %v256
    %301 = vmatpush1.msra.mxu0 %v255
    %302 = vmatprep.subr.mxu0 %v254
    %303 = vmatpush1.msra.mxu0 %v253
    %304 = vmatprep.subr.mxu0 0.0
    %305 = vmatpush2.msra.mxu0 0.0
    %306 = vmatprep.subr.mxu0 0.0
    %307 = vmatpush2.msra.mxu0 0.0
    %308 = vmatprep.subr.mxu0 0.0
    %309 = vmatpush2.msra.mxu0 0.0
    %310 = vmatprep.subr.mxu0 0.0
    %311 = vmatpush2.msra.mxu0 0.0
    %312 = vmatprep.subr.mxu0 0.0
    %313 = vmatpush2.msra.mxu0 0.0
    %314 = vmatprep.subr.mxu0 0.0
    %315 = vmatpush2.msra.mxu0 0.0
    %316 = vmatprep.subr.mxu0 0.0
    %317 = vmatpush2.msra.mxu0 0.0
    %318 = vmatprep.subr.mxu0 0.0
    %319 = vmatpush2.msra.mxu0 0.0
    %320 = vmatprep.subr.mxu0 0.0
    %321 = vmatpush2.msra.mxu0 0.0
    %322 = vmatprep.subr.mxu0 0.0
    %323 = vmatpush2.msra.mxu0 0.0
    %324 = vmatprep.subr.mxu0 0.0
    %325 = vmatpush2.msra.mxu0 0.0
    %326 = vmatprep.subr.mxu0 0.0
    %327 = vmatpush2.msra.mxu0 0.0
    %328 = vmatprep.subr.mxu0 0.0
    %329 = vmatpush2.msra.mxu0 0.0
    %330 = vmatprep.subr.mxu0 0.0
    %331 = vmatpush2.msra.mxu0 0.0
    %332 = vmatprep.subr.mxu0 0.0
    %333 = vmatpush2.msra.mxu0 0.0
    %334 = vmatprep.subr.mxu0 0.0
    %335 = vmatpush2.msra.mxu0 0.0
    %336 = vmatprep.mubr.f32.mxu0 0.0
    %337 = vmatmul.mubr.f32.gmra.mxu0 %v264
    %v338 = vpop.f32.mrf.mxu0
    %v339 = vadd.f32 0.0, %v338
    %v340 = vpop.f32.mrf.mxu0
    %v341 = vadd.f32 0.0, %v340
    %342 = vdwg.mxu0
    %v343 = vadd.f32 %v339, %v341
    %344 = vadd.xlane.f32.xlu0 %v343
    %v345 = vpop.xlane.xlu0 %344
    %v346 = vrcp.pop 256.0
    %v347 = vmul.f32 %v345, %v346
    %v348 = vmul.f32 %v339, %v339
    %v349 = vmul.f32 %v341, %v341
    %v350 = vadd.f32 %v348, %v349
    %351 = vadd.xlane.f32.xlu0 %v350
    %v352 = vpop.xlane.xlu0 %351
    %v353 = vmul.f32 %v352, %v346
    %v354 = vmul.f32 %v347, %v347
    %v355 = vsub.f32 %v353, %v354
    %v356 = vsub.f32 %v339, %v347
    %v357 = vsub.f32 %v341, %v347
    %v358 = vadd.f32 %v355, 1e-05
    %v359 = vrsqrt.pop %v358
    %v360 = vmul.f32 %v356, %v359
    %v361 = vmul.f32 %v357, %v359
    %v362 = vmax.f32 %v360, 0.0
    %v363 = vmax.f32 %v361, 0.0
    %v364 = vld [vmem:[%s3] sm:$0xff]
    %v365 = vld [vmem:[%s4] sm:$0xff]
    %367 = vset.pattern.permute.xlu0 0
    %368 = vperm.xlu0 %367, %v365
    %v369 = vpop.permute.xlu0 %368
    %vm371 = vcmask 31744
    %v373 = vsel %vm371, %v364, 0
    %v375 = vsel %vm252, %v47, 0
    %v377 = vsel %vm252, %v49, 0
    %379 = vmatprep.subr.mxu0 0.0
    %380 = vmatpush1.msra.mxu0 0.0
    %381 = vmatprep.subr.mxu0 0.0
    %382 = vmatpush1.msra.mxu0 0.0
    %383 = vmatprep.subr.mxu0 0.0
    %384 = vmatpush1.msra.mxu0 0.0
    %385 = vmatprep.subr.mxu0 0.0
    %386 = vmatpush1.msra.mxu0 0.0
    %387 = vmatprep.subr.mxu0 0.0
    %388 = vmatpush1.msra.mxu0 0.0
    %389 = vmatprep.subr.mxu0 0.0
    %390 = vmatpush1.msra.mxu0 0.0
    %391 = vmatprep.subr.mxu0 0.0
    %392 = vmatpush1.msra.mxu0 0.0
    %393 = vmatprep.subr.mxu0 0.0
    %394 = vmatpush1.msra.mxu0 0.0
    %395 = vmatprep.subr.mxu0 0.0
    %396 = vmatpush1.msra.mxu0 0.0
    %397 = vmatprep.subr.mxu0 0.0
    %398 = vmatpush1.msra.mxu0 0.0
    %399 = vmatprep.subr.mxu0 0.0
    %400 = vmatpush1.msra.mxu0 0.0
    %401 = vmatprep.subr.mxu0 0.0
    %402 = vmatpush1.msra.mxu0 0.0
    %403 = vmatprep.subr.mxu0 0.0
    %404 = vmatpush1.msra.mxu0 0.0
    %405 = vmatprep.subr.mxu0 0.0
    %406 = vmatpush1.msra.mxu0 0.0
    %407 = vmatprep.subr.mxu0 0.0
    %408 = vmatpush1.msra.mxu0 0.0
    %409 = vmatprep.subr.mxu0 %v377
    %410 = vmatpush1.msra.mxu0 %v375
    %411 = vmatprep.subr.mxu0 0.0
    %412 = vmatpush2.msra.mxu0 0.0
    %413 = vmatprep.subr.mxu0 0.0
    %414 = vmatpush2.msra.mxu0 0.0
    %415 = vmatprep.subr.mxu0 0.0
    %416 = vmatpush2.msra.mxu0 0.0
    %417 = vmatprep.subr.mxu0 0.0
    %418 = vmatpush2.msra.mxu0 0.0
    %419 = vmatprep.subr.mxu0 0.0
    %420 = vmatpush2.msra.mxu0 0.0
    %421 = vmatprep.subr.mxu0 0.0
    %422 = vmatpush2.msra.mxu0 0.0
    %423 = vmatprep.subr.mxu0 0.0
    %424 = vmatpush2.msra.mxu0 0.0
    %425 = vmatprep.subr.mxu0 0.0
    %426 = vmatpush2.msra.mxu0 0.0
    %427 = vmatprep.subr.mxu0 0.0
    %428 = vmatpush2.msra.mxu0 0.0
    %429 = vmatprep.subr.mxu0 0.0
    %430 = vmatpush2.msra.mxu0 0.0
    %431 = vmatprep.subr.mxu0 0.0
    %432 = vmatpush2.msra.mxu0 0.0
    %433 = vmatprep.subr.mxu0 0.0
    %434 = vmatpush2.msra.mxu0 0.0
    %435 = vmatprep.subr.mxu0 0.0
    %436 = vmatpush2.msra.mxu0 0.0
    %437 = vmatprep.subr.mxu0 0.0
    %438 = vmatpush2.msra.mxu0 0.0
    %439 = vmatprep.subr.mxu0 0.0
    %440 = vmatpush2.msra.mxu0 0.0
    %441 = vmatprep.subr.mxu0 0.0
    %442 = vmatpush2.msra.mxu0 0.0
    %443 = vmatprep.mubr.f32.mxu0 0.0
    %444 = vmatmul.mubr.f32.gmra.mxu0 %v373
    %v445 = vpop.f32.mrf.mxu0
    %v446 = vadd.f32 %v369, %v445
    %v447 = vpop.f32.mrf.mxu0
    %v448 = vadd.f32 %v369, %v447
    %449 = vdwg.mxu0
    %v450 = vadd.f32 %v446, %v362
    %v451 = vadd.f32 %v448, %v363
    %452 = vst [vmem:[#allocation7] sm:$0xff] %v450
    %453 = vst [vmem:[#allocation7 + $0x8] sm:$0xff] %v451
    %s454 = scalar_lea.vmem [#allocation2], 8
    %v455 = vld [vmem:[%s454] sm:$0xff]
    %v457 = vcombine.high %v455, %v455
    %459 = vrot.lane.b32.xlu0 %v455, 17
    %v460 = vpop.permute.xlu0 %459
    %461 = vrot.lane.b32.xlu0 %v457, 17
    %v462 = vpop.permute.xlu0 %461
    %v463 = vsel %vm57, %v460, %v462
    %v464 = vsel %vm57, %v462, %v460
    %v465 = vld [vmem:[%s1] sm:$0x3]
    %v467 = vlaneseq
    %v468 = vshrl.u32 %v467, 7
    %v469 = vsub.s32 0, %v468
    %v470 = vrot.slane %v465, %v469
    %v471 = vlaneseq
    %v472 = vshrl.u32 %v471, 7
    %v473 = vsub.s32 1, %v472
    %v474 = vrot.slane %v465, %v473
    %v477 = vmul.f32 %v464, %v470
    %v478 = vmul.f32 %v463, %v474
    %479 = vrot.lane.b32.xlu0 %v455, 16
    %v480 = vpop.permute.xlu0 %479
    %481 = vrot.lane.b32.xlu0 %v457, 16
    %v482 = vpop.permute.xlu0 %481
    %v483 = vsel %vm78, %v480, %v482
    %v484 = vsel %vm78, %v482, %v480
    %v485 = vld [vmem:[%s81] sm:$0x3]
    %v487 = vlaneseq
    %v488 = vshrl.u32 %v487, 7
    %v489 = vsub.s32 0, %v488
    %v490 = vrot.slane %v485, %v489
    %v491 = vlaneseq
    %v492 = vshrl.u32 %v491, 7
    %v493 = vsub.s32 1, %v492
    %v494 = vrot.slane %v485, %v493
    %v497 = vmul.f32 %v484, %v490
    %v498 = vmul.f32 %v483, %v494
    %499 = vrot.lane.b32.xlu0 %v455, 15
    %v500 = vpop.permute.xlu0 %499
    %501 = vrot.lane.b32.xlu0 %v457, 15
    %v502 = vpop.permute.xlu0 %501
    %v503 = vsel %vm100, %v500, %v502
    %v504 = vsel %vm100, %v502, %v500
    %v505 = vld [vmem:[%s103] sm:$0x3]
    %v507 = vlaneseq
    %v508 = vshrl.u32 %v507, 7
    %v509 = vsub.s32 0, %v508
    %v510 = vrot.slane %v505, %v509
    %v511 = vlaneseq
    %v512 = vshrl.u32 %v511, 7
    %v513 = vsub.s32 1, %v512
    %v514 = vrot.slane %v505, %v513
    %v517 = vmul.f32 %v504, %v510
    %v518 = vmul.f32 %v503, %v514
    %519 = vrot.lane.b32.xlu0 %v455, 1
    %v520 = vpop.permute.xlu0 %519
    %521 = vrot.lane.b32.xlu0 %v457, 1
    %v522 = vpop.permute.xlu0 %521
    %v523 = vsel %vm122, %v520, %v522
    %v524 = vsel %vm122, %v522, %v520
    %v525 = vld [vmem:[%s125] sm:$0x3]
    %v527 = vlaneseq
    %v528 = vshrl.u32 %v527, 7
    %v529 = vsub.s32 0, %v528
    %v530 = vrot.slane %v525, %v529
    %v531 = vlaneseq
    %v532 = vshrl.u32 %v531, 7
    %v533 = vsub.s32 1, %v532
    %v534 = vrot.slane %v525, %v533
    %v537 = vmul.f32 %v524, %v530
    %v538 = vmul.f32 %v523, %v534
    %539 = vrot.lane.b32.xlu0 %v455, 127
    %v540 = vpop.permute.xlu0 %539
    %541 = vrot.lane.b32.xlu0 %v457, 127
    %v542 = vpop.permute.xlu0 %541
    %v543 = vsel %vm144, %v540, %v542
    %v544 = vsel %vm144, %v542, %v540
    %v545 = vld [vmem:[%s147] sm:$0x3]
    %v547 = vlaneseq
    %v548 = vshrl.u32 %v547, 7
    %v549 = vsub.s32 0, %v548
    %v550 = vrot.slane %v545, %v549
    %v551 = vlaneseq
    %v552 = vshrl.u32 %v551, 7
    %v553 = vsub.s32 1, %v552
    %v554 = vrot.slane %v545, %v553
    %v557 = vmul.f32 %v543, %v550
    %v558 = vmul.f32 %v544, %v554
    %559 = vrot.lane.b32.xlu0 %v455, 113
    %v560 = vpop.permute.xlu0 %559
    %561 = vrot.lane.b32.xlu0 %v457, 113
    %v562 = vpop.permute.xlu0 %561
    %v563 = vsel %vm166, %v560, %v562
    %v564 = vsel %vm166, %v562, %v560
    %v565 = vld [vmem:[%s169] sm:$0x3]
    %v567 = vlaneseq
    %v568 = vshrl.u32 %v567, 7
    %v569 = vsub.s32 0, %v568
    %v570 = vrot.slane %v565, %v569
    %v571 = vlaneseq
    %v572 = vshrl.u32 %v571, 7
    %v573 = vsub.s32 1, %v572
    %v574 = vrot.slane %v565, %v573
    %v577 = vmul.f32 %v563, %v570
    %v578 = vmul.f32 %v564, %v574
    %579 = vrot.lane.b32.xlu0 %v455, 112
    %v580 = vpop.permute.xlu0 %579
    %581 = vrot.lane.b32.xlu0 %v457, 112
    %v582 = vpop.permute.xlu0 %581
    %v583 = vsel %vm188, %v580, %v582
    %v584 = vsel %vm188, %v582, %v580
    %v585 = vld [vmem:[%s191] sm:$0x3]
    %v587 = vlaneseq
    %v588 = vshrl.u32 %v587, 7
    %v589 = vsub.s32 0, %v588
    %v590 = vrot.slane %v585, %v589
    %v591 = vlaneseq
    %v592 = vshrl.u32 %v591, 7
    %v593 = vsub.s32 1, %v592
    %v594 = vrot.slane %v585, %v593
    %v597 = vmul.f32 %v583, %v590
    %v598 = vmul.f32 %v584, %v594
    %599 = vrot.lane.b32.xlu0 %v455, 111
    %v600 = vpop.permute.xlu0 %599
    %601 = vrot.lane.b32.xlu0 %v457, 111
    %v602 = vpop.permute.xlu0 %601
    %v603 = vsel %vm210, %v600, %v602
    %v604 = vsel %vm210, %v602, %v600
    %v605 = vld [vmem:[%s213] sm:$0x3]
    %v607 = vlaneseq
    %v608 = vshrl.u32 %v607, 7
    %v609 = vsub.s32 0, %v608
    %v610 = vrot.slane %v605, %v609
    %v611 = vlaneseq
    %v612 = vshrl.u32 %v611, 7
    %v613 = vsub.s32 1, %v612
    %v614 = vrot.slane %v605, %v613
    %v617 = vmul.f32 %v603, %v610
    %v618 = vmul.f32 %v604, %v614
    %v621 = vrot.slane %v497, 4
    %v622 = vrot.slane %v498, 4
    %v627 = vrot.slane %v537, 4
    %v628 = vrot.slane %v538, 4
    %v633 = vrot.slane %v557, 4
    %v634 = vrot.slane %v558, 4
    %v639 = vrot.slane %v597, 4
    %v640 = vrot.slane %v598, 4
    %v643 = vsel %vm252, %v477, %v621
    %v644 = vsel %vm252, %v478, %v622
    %v645 = vsel %vm252, %v517, %v627
    %v646 = vsel %vm252, %v518, %v628
    %v647 = vsel %vm252, %v455, %v633
    %v648 = vsel %vm252, %v457, %v634
    %v649 = vsel %vm252, %v577, %v639
    %v650 = vsel %vm252, %v578, %v640
    %v651 = vld [vmem:[#allocation5] sm:$0xff]
    %v653 = vsel %vm262, %v651, 0
    %v656 = vsel %vm252, %v617, 0
    %v659 = vsel %vm252, %v618, 0
    %661 = vmatprep.subr.mxu0 0.0
    %662 = vmatpush1.msra.mxu0 0.0
    %663 = vmatprep.subr.mxu0 0.0
    %664 = vmatpush1.msra.mxu0 0.0
    %665 = vmatprep.subr.mxu0 0.0
    %666 = vmatpush1.msra.mxu0 0.0
    %667 = vmatprep.subr.mxu0 0.0
    %668 = vmatpush1.msra.mxu0 0.0
    %669 = vmatprep.subr.mxu0 0.0
    %670 = vmatpush1.msra.mxu0 0.0
    %671 = vmatprep.subr.mxu0 0.0
    %672 = vmatpush1.msra.mxu0 0.0
    %673 = vmatprep.subr.mxu0 0.0
    %674 = vmatpush1.msra.mxu0 0.0
    %675 = vmatprep.subr.mxu0 0.0
    %676 = vmatpush1.msra.mxu0 0.0
    %677 = vmatprep.subr.mxu0 0.0
    %678 = vmatpush1.msra.mxu0 0.0
    %679 = vmatprep.subr.mxu0 0.0
    %680 = vmatpush1.msra.mxu0 0.0
    %681 = vmatprep.subr.mxu0 0.0
    %682 = vmatpush1.msra.mxu0 0.0
    %683 = vmatprep.subr.mxu0 %v659
    %684 = vmatpush1.msra.mxu0 %v656
    %685 = vmatprep.subr.mxu0 %v650
    %686 = vmatpush1.msra.mxu0 %v649
    %687 = vmatprep.subr.mxu0 %v648
    %688 = vmatpush1.msra.mxu0 %v647
    %689 = vmatprep.subr.mxu0 %v646
    %690 = vmatpush1.msra.mxu0 %v645
    %691 = vmatprep.subr.mxu0 %v644
    %692 = vmatpush1.msra.mxu0 %v643
    %693 = vmatprep.subr.mxu0 0.0
    %694 = vmatpush2.msra.mxu0 0.0
    %695 = vmatprep.subr.mxu0 0.0
    %696 = vmatpush2.msra.mxu0 0.0
    %697 = vmatprep.subr.mxu0 0.0
    %698 = vmatpush2.msra.mxu0 0.0
    %699 = vmatprep.subr.mxu0 0.0
    %700 = vmatpush2.msra.mxu0 0.0
    %701 = vmatprep.subr.mxu0 0.0
    %702 = vmatpush2.msra.mxu0 0.0
    %703 = vmatprep.subr.mxu0 0.0
    %704 = vmatpush2.msra.mxu0 0.0
    %705 = vmatprep.subr.mxu0 0.0
    %706 = vmatpush2.msra.mxu0 0.0
    %707 = vmatprep.subr.mxu0 0.0
    %708 = vmatpush2.msra.mxu0 0.0
    %709 = vmatprep.subr.mxu0 0.0
    %710 = vmatpush2.msra.mxu0 0.0
    %711 = vmatprep.subr.mxu0 0.0
    %712 = vmatpush2.msra.mxu0 0.0
    %713 = vmatprep.subr.mxu0 0.0
    %714 = vmatpush2.msra.mxu0 0.0
    %715 = vmatprep.subr.mxu0 0.0
    %716 = vmatpush2.msra.mxu0 0.0
    %717 = vmatprep.subr.mxu0 0.0
    %718 = vmatpush2.msra.mxu0 0.0
    %719 = vmatprep.subr.mxu0 0.0
    %720 = vmatpush2.msra.mxu0 0.0
    %721 = vmatprep.subr.mxu0 0.0
    %722 = vmatpush2.msra.mxu0 0.0
    %723 = vmatprep.subr.mxu0 0.0
    %724 = vmatpush2.msra.mxu0 0.0
    %725 = vmatprep.mubr.f32.mxu0 0.0
    %726 = vmatmul.mubr.f32.gmra.mxu0 %v653
    %v727 = vpop.f32.mrf.mxu0
    %v728 = vadd.f32 0.0, %v727
    %v729 = vpop.f32.mrf.mxu0
    %v730 = vadd.f32 0.0, %v729
    %731 = vdwg.mxu0
    %v732 = vadd.f32 %v728, %v730
    %733 = vadd.xlane.f32.xlu0 %v732
    %v734 = vpop.xlane.xlu0 %733
    %v735 = vmul.f32 %v734, %v346
    %v736 = vmul.f32 %v728, %v728
    %v737 = vmul.f32 %v730, %v730
    %v738 = vadd.f32 %v736, %v737
    %739 = vadd.xlane.f32.xlu0 %v738
    %v740 = vpop.xlane.xlu0 %739
    %v741 = vmul.f32 %v740, %v346
    %v742 = vmul.f32 %v735, %v735
    %v743 = vsub.f32 %v741, %v742
    %v744 = vsub.f32 %v728, %v735
    %v745 = vsub.f32 %v730, %v735
    %v746 = vadd.f32 %v743, 1e-05
    %v747 = vrsqrt.pop %v746
    %v748 = vmul.f32 %v744, %v747
    %v749 = vmul.f32 %v745, %v747
    %v750 = vmax.f32 %v748, 0.0
    %v751 = vmax.f32 %v749, 0.0
    %v752 = vld [vmem:[%s3] sm:$0xff]
    %v753 = vld [vmem:[%s4] sm:$0xff]
    %755 = vset.pattern.permute.xlu0 0
    %756 = vperm.xlu0 %755, %v753
    %v757 = vpop.permute.xlu0 %756
    %v760 = vsel %vm371, %v752, 0
    %v762 = vsel %vm252, %v455, 0
    %v764 = vsel %vm252, %v457, 0
    %766 = vmatprep.subr.mxu0 0.0
    %767 = vmatpush1.msra.mxu0 0.0
    %768 = vmatprep.subr.mxu0 0.0
    %769 = vmatpush1.msra.mxu0 0.0
    %770 = vmatprep.subr.mxu0 0.0
    %771 = vmatpush1.msra.mxu0 0.0
    %772 = vmatprep.subr.mxu0 0.0
    %773 = vmatpush1.msra.mxu0 0.0
    %774 = vmatprep.subr.mxu0 0.0
    %775 = vmatpush1.msra.mxu0 0.0
    %776 = vmatprep.subr.mxu0 0.0
    %777 = vmatpush1.msra.mxu0 0.0
    %778 = vmatprep.subr.mxu0 0.0
    %779 = vmatpush1.msra.mxu0 0.0
    %780 = vmatprep.subr.mxu0 0.0
    %781 = vmatpush1.msra.mxu0 0.0
    %782 = vmatprep.subr.mxu0 0.0
    %783 = vmatpush1.msra.mxu0 0.0
    %784 = vmatprep.subr.mxu0 0.0
    %785 = vmatpush1.msra.mxu0 0.0
    %786 = vmatprep.subr.mxu0 0.0
    %787 = vmatpush1.msra.mxu0 0.0
    %788 = vmatprep.subr.mxu0 0.0
    %789 = vmatpush1.msra.mxu0 0.0
    %790 = vmatprep.subr.mxu0 0.0
    %791 = vmatpush1.msra.mxu0 0.0
    %792 = vmatprep.subr.mxu0 0.0
    %793 = vmatpush1.msra.mxu0 0.0
    %794 = vmatprep.subr.mxu0 0.0
    %795 = vmatpush1.msra.mxu0 0.0
    %796 = vmatprep.subr.mxu0 %v764
    %797 = vmatpush1.msra.mxu0 %v762
    %798 = vmatprep.subr.mxu0 0.0
    %799 = vmatpush2.msra.mxu0 0.0
    %800 = vmatprep.subr.mxu0 0.0
    %801 = vmatpush2.msra.mxu0 0.0
    %802 = vmatprep.subr.mxu0 0.0
    %803 = vmatpush2.msra.mxu0 0.0
    %804 = vmatprep.subr.mxu0 0.0
    %805 = vmatpush2.msra.mxu0 0.0
    %806 = vmatprep.subr.mxu0 0.0
    %807 = vmatpush2.msra.mxu0 0.0
    %808 = vmatprep.subr.mxu0 0.0
    %809 = vmatpush2.msra.mxu0 0.0
    %810 = vmatprep.subr.mxu0 0.0
    %811 = vmatpush2.msra.mxu0 0.0
    %812 = vmatprep.subr.mxu0 0.0
    %813 = vmatpush2.msra.mxu0 0.0
    %814 = vmatprep.subr.mxu0 0.0
    %815 = vmatpush2.msra.mxu0 0.0
    %816 = vmatprep.subr.mxu0 0.0
    %817 = vmatpush2.msra.mxu0 0.0
    %818 = vmatprep.subr.mxu0 0.0
    %819 = vmatpush2.msra.mxu0 0.0
    %820 = vmatprep.subr.mxu0 0.0
    %821 = vmatpush2.msra.mxu0 0.0
    %822 = vmatprep.subr.mxu0 0.0
    %823 = vmatpush2.msra.mxu0 0.0
    %824 = vmatprep.subr.mxu0 0.0
    %825 = vmatpush2.msra.mxu0 0.0
    %826 = vmatprep.subr.mxu0 0.0
    %827 = vmatpush2.msra.mxu0 0.0
    %828 = vmatprep.subr.mxu0 0.0
    %829 = vmatpush2.msra.mxu0 0.0
    %830 = vmatprep.mubr.f32.mxu0 0.0
    %831 = vmatmul.mubr.f32.gmra.mxu0 %v760
    %v832 = vpop.f32.mrf.mxu0
    %v833 = vadd.f32 %v757, %v832
    %v834 = vpop.f32.mrf.mxu0
    %v835 = vadd.f32 %v757, %v834
    %836 = vdwg.mxu0
    %v837 = vadd.f32 %v833, %v750
    %v838 = vadd.f32 %v835, %v751
    %s839 = scalar_lea.vmem [#allocation7], 16
    %840 = vst [vmem:[%s839] sm:$0xff] %v837
    %841 = vst [vmem:[%s839 + $0x8] sm:$0xff] %v838
    // Predicated region
    $region30: #{tpu_custom_call.1} parent=1 // pred_check
      _
    $region31: #{tpu_custom_call.1} parent=1 // pred_check_branch
      %843 = sbr.rel (0) target = $region33
    $region32: #{tpu_custom_call.1} parent=1 // pred_region
      %s845 = ssub.s32 512, 512
      %846 = vsyncadd [#allocation4], %s845
      %s847 = sshll.u32 [#allocation7], 4
      %s848 = int_to_ptr.vmem [resolvable:$true] %s847
      %853 = dma.vmem_to_hbm [thread:$0]  %s848, 512, %s5, [#allocation4], 256, 256, 16
    $region33: #{tpu_custom_call.1} parent=1 // pred_fallthru
      _
    // Predicated region
    $region34: #{tpu_custom_call.1} parent=1 // pred_check
      _
    $region35: #{tpu_custom_call.1} parent=1 // pred_check_branch
      %855 = sbr.rel (0) target = $region37
    $region36: #{tpu_custom_call.1} parent=1 // pred_region
      %856 = dma.done [#allocation4], 512
    $region37: #{tpu_custom_call.1} parent=1 // pred_fallthru
      _
    %857 = vsyncpa [#allocation3], 1
    %858 = vsyncpa [#allocation6], 1
    %859 = vsyncpa [#allocation4], 1

</llo_original>
